<compile_context>
chip_gen: v5e
topology: v5e:2x2
jax: 0.10.0
libtpu: 0.0.40
codegen_flags: <defaults>
</compile_context>

<pallas_src>
import functools

import jax
import jax.numpy as jnp
from jax.experimental import pallas as pl
from jax.experimental.pallas import tpu as pltpu

# ---------------- config (small, forward-consistent shapes) -----------------
B = 8          # batch size
DV = 64        # arg.visual_feature_dim
DT = 32        # arg.text_feature_dim  (Polyvore_519 text path)
H = 32         # arg.hidden_dim
USER_NUM = 16  # arg.user_num
ITEM_NUM = 32  # arg.item_num
WEIGHT_P = 0.6  # arg.weight_P

EPS_NORM = 1e-12   # torch.nn.functional.normalize default eps
EPS_COS = 1e-8     # torch.nn.functional.cosine_similarity default eps


# ------------------------------ kernel helpers ------------------------------
def _norm_dim0(x):
    # F.normalize(x, dim=0): per-column L2 normalization over the batch axis.
    # x / max(||x||, eps) == x * rsqrt(max(ss, eps^2))  (rsqrt -> EUP slot)
    ss = jnp.sum(x * x, axis=0, keepdims=True)
    return x * jax.lax.rsqrt(jnp.maximum(ss, EPS_NORM * EPS_NORM))


# --------------------------------- kernel -----------------------------------
def gpbpr_kernel(idx_ref, item_ref, theta_ref, w_ref, b_ref, out_ref):
    # idx layout (rows): [Us | Is | Js | Ks], each of length B.
    idx = idx_ref[...]                                   # [4B, 1] int32
    u_idx = idx[0:B, :]                                  # [B, 1]
    it_idx = idx[B:4 * B, :]                             # [3B, 1] (I | J | K)

    # ---- in-kernel gathers as one-hot MXU matmuls ---------------------------
    it_oh = (it_idx == jax.lax.broadcasted_iota(
        jnp.int32, (3 * B, ITEM_NUM), 1)).astype(jnp.float32)   # [3B, ITEM_NUM]
    feat = jnp.dot(it_oh, item_ref[...],
                   preferred_element_type=jnp.float32)          # [3B, DV+DT]

    u_oh = (u_idx == jax.lax.broadcasted_iota(
        jnp.int32, (B, USER_NUM), 1)).astype(jnp.float32)       # [B, USER_NUM]
    theta = jnp.dot(u_oh, theta_ref[...],
                    preferred_element_type=jnp.float32)         # [B, 2H]

    # ---- one fused Linear + Sigmoid -----------------------------------------
    # [3B, DV+DT] @ block_diag([wv|wpv], [wt|wpt]) + [bv|bpv|bt|bpt]
    # column layout of h: [vis_nn | p_vis_nn | txt_nn | p_txt_nn]  (4H = 128)
    h = jax.nn.sigmoid(
        jnp.dot(feat, w_ref[...], preferred_element_type=jnp.float32)
        + b_ref[...])

    # ---- with_Nor: F.normalize(dim=0), applied per I / J / K block ----------
    hI = _norm_dim0(h[0 * B:1 * B, :])
    hJ = _norm_dim0(h[1 * B:2 * B, :])
    hK = _norm_dim0(h[2 * B:3 * B, :])
    th = _norm_dim0(theta)                 # columns: [theta_vis | theta_txt]

    def seg(x, s):
        return x[:, s * H:(s + 1) * H]

    def ss(x):
        return jnp.sum(x * x, axis=-1, keepdims=True)

    # query segments vs the J / K latent blocks:
    #   0: cos(I_v, {J,K}_v)      (visual_ij / visual_ik)
    #   1: cos(theta_v, {J,K}_vp) (VTBPR visual part, b_PC=True -> p latents)
    #   2: cos(I_t, {J,K}_t)      (text_ij / text_ik)
    #   3: cos(theta_t, {J,K}_tp) (VTBPR text part)
    qsegs = [seg(hI, 0), seg(th, 0), seg(hI, 2), seg(th, 1)]
    ss_q = [ss(x) for x in qsegs]

    def cos_all(hX):
        out = []
        for s in range(4):
            x = seg(hX, s)
            num = jnp.sum(qsegs[s] * x, axis=-1, keepdims=True)
            den = jnp.maximum(ss_q[s] * ss(x), EPS_COS * EPS_COS)
            out.append(num * jax.lax.rsqrt(den))
        return out

    cj = cos_all(hJ)
    ck = cos_all(hK)

    p_ij = 0.5 * (cj[0] + cj[2])
    p_ik = 0.5 * (ck[0] + ck[2])
    cuj = cj[1] + cj[3]
    cuk = ck[1] + ck[3]
    pred = (WEIGHT_P * p_ij + (1.0 - WEIGHT_P) * cuj
            - (WEIGHT_P * p_ik + (1.0 - WEIGHT_P) * cuk))         # [B, 1]

    # lane-dense (unmasked) store: fill the whole 128-lane vreg.
    out_ref[...] = jnp.broadcast_to(pred, (B, 128))


# --------------------------------- wrapper ----------------------------------
@jax.jit
def gpbpr_forward(Us, Is, Js, Ks, packed):
    # single tiny index pack instead of 8 separate XLA gathers
    idx = jnp.concatenate([Us, Is, Js, Ks]).astype(jnp.int32).reshape(4 * B, 1)

    vmem = pl.BlockSpec(memory_space=pltpu.MemorySpace.VMEM)
    out = pl.pallas_call(
        gpbpr_kernel,
        out_shape=jax.ShapeDtypeStruct((B, 128), jnp.float32),
        in_specs=[vmem, vmem, vmem, vmem, vmem],
        out_specs=vmem,
    )(idx, packed["item_feat"], packed["theta"], packed["w_all"], packed["bias"])
    return out[:, 0]


def pack_params(p):
    """One-time host-side packing: few large operands instead of 16 tiny ones."""
    w_all = jnp.zeros((DV + DT, 4 * H), jnp.float32)
    w_all = w_all.at[:DV, :2 * H].set(jnp.concatenate([p["wv"], p["wpv"]], axis=1))
    w_all = w_all.at[DV:, 2 * H:].set(jnp.concatenate([p["wt"], p["wpt"]], axis=1))
    return {
        "item_feat": jnp.concatenate([p["visual_features"], p["text_features"]],
                                     axis=1),                       # (ITEM_NUM, DV+DT)
        "theta": jnp.concatenate([p["theta_user_visual"], p["theta_user_text"]],
                                 axis=1),                           # (USER_NUM, 2H)
        "w_all": w_all,                                             # (DV+DT, 4H)
        "bias": jnp.concatenate([p["bv"], p["bpv"], p["bt"], p["bpt"]], axis=1),
    }


# ----------------------------- pure-JAX reference ---------------------------
def gpbpr_reference(Us, Is, Js, Ks, p):
    def lin_sig(x, w, b):
        return jax.nn.sigmoid(x @ w + b)

    def norm0(x):
        return x / jnp.maximum(jnp.linalg.norm(x, axis=0, keepdims=True), EPS_NORM)

    def cos(a, b):
        num = jnp.sum(a * b, -1)
        den = jnp.linalg.norm(a, axis=-1) * jnp.linalg.norm(b, axis=-1)
        return num / jnp.maximum(den, EPS_COS)

    vI, vJ, vK = (p["visual_features"][x] for x in (Is, Js, Ks))
    tI, tJ, tK = (p["text_features"][x] for x in (Is, Js, Ks))
    Iv, Jv, Kv = (norm0(lin_sig(x, p["wv"], p["bv"])) for x in (vI, vJ, vK))
    Jvp, Kvp = (norm0(lin_sig(x, p["wpv"], p["bpv"])) for x in (vJ, vK))
    It, Jt, Kt = (norm0(lin_sig(x, p["wt"], p["bt"])) for x in (tI, tJ, tK))
    Jtp, Ktp = (norm0(lin_sig(x, p["wpt"], p["bpt"])) for x in (tJ, tK))
    thv = norm0(p["theta_user_visual"][Us])
    tht = norm0(p["theta_user_text"][Us])
    cuj = cos(thv, Jvp) + cos(tht, Jtp)
    cuk = cos(thv, Kvp) + cos(tht, Ktp)
    p_ij = 0.5 * (cos(Iv, Jv) + cos(It, Jt))
    p_ik = 0.5 * (cos(Iv, Kv) + cos(It, Kt))
    return (WEIGHT_P * p_ij + (1 - WEIGHT_P) * cuj
            - (WEIGHT_P * p_ik + (1 - WEIGHT_P) * cuk))


# ------------------------------ param init ----------------------------------
def init_params(key):
    ks = jax.random.split(key, 12)
    u = functools.partial(jax.random.uniform, minval=0.0, maxval=0.001,
                          dtype=jnp.float32)
    return {
        # item content features (given to the module at construction time)
        "visual_features": jax.random.normal(ks[0], (ITEM_NUM, DV), jnp.float32),
        "text_features": jax.random.normal(ks[1], (ITEM_NUM, DT), jnp.float32),
        # visual_nn / p_visual_nn  (uniform_(0, 0.001) weight & bias)
        "wv": u(ks[2], (DV, H)), "bv": u(ks[3], (1, H)),
        "wpv": u(ks[4], (DV, H)), "bpv": u(ks[5], (1, H)),
        # text_nn / p_text_nn
        "wt": u(ks[6], (DT, H)), "bt": u(ks[7], (1, H)),
        "wpt": u(ks[8], (DT, H)), "bpt": u(ks[9], (1, H)),
        # VTBPR user theta embeddings (nn.Embedding default ~ N(0,1))
        "theta_user_visual": jax.random.normal(ks[10], (USER_NUM, H), jnp.float32),
        "theta_user_text": jax.random.normal(ks[11], (USER_NUM, H), jnp.float32),
    }
# TODO(synk): IQON3000 TextCNN branch (text_embedding + textcnn), the unused
# self.bpr module and GPBPR.inference()/wide_infer() are not implemented
# (sources not provided / not on the training forward path).


if __name__ == "__main__":
    key = jax.random.PRNGKey(0)
    pk, bk = jax.random.split(key)
    params = init_params(pk)
    packed = pack_params(params)   # one-time host-side packing

    k1, k2, k3, k4 = jax.random.split(bk, 4)
    Us = jax.random.randint(k1, (B,), 0, USER_NUM, dtype=jnp.int32)
    Is = jax.random.randint(k2, (B,), 0, ITEM_NUM, dtype=jnp.int32)
    Js = jax.random.randint(k3, (B,), 0, ITEM_NUM, dtype=jnp.int32)
    Ks = jax.random.randint(k4, (B,), 0, ITEM_NUM, dtype=jnp.int32)

    pred = jax.block_until_ready(gpbpr_forward(Us, Is, Js, Ks, packed))
    ref = gpbpr_reference(Us, Is, Js, Ks, params)
    assert pred.shape == (B,)
    assert jnp.allclose(pred, ref, atol=1e-5, rtol=1e-4), (pred, ref)
    print("KERNEL_OK")
</pallas_src>

<mosaic_0001>
module attributes {stable_mosaic.version = 11 : i64} {
  func.func @gpbpr_kernel(%arg0: memref<32x1xi32, #tpu.memory_space<vmem>>, %arg1: memref<32x96xf32, #tpu.memory_space<vmem>>, %arg2: memref<16x64xf32, #tpu.memory_space<vmem>>, %arg3: memref<96x128xf32, #tpu.memory_space<vmem>>, %arg4: memref<1x128xf32, #tpu.memory_space<vmem>>, %arg5: memref<8x128xf32, #tpu.memory_space<vmem>>) attributes {dimension_semantics = [], scalar_prefetch = 0 : i64, scratch_operands = 0 : i64, tpu.core_type = #tpu.core_type<tc>} {
    %c0 = arith.constant 0 : index
    %c0_0 = arith.constant 0 : index
    %0 = vector.load %arg0[%c0, %c0_0] : memref<32x1xi32, #tpu.memory_space<vmem>>, vector<32x1xi32>
    %1 = vector.extract_strided_slice %0 {offsets = [0, 0], sizes = [8, 1], strides = [1, 1]} : vector<32x1xi32> to vector<8x1xi32>
    %2 = vector.extract_strided_slice %0 {offsets = [8, 0], sizes = [24, 1], strides = [1, 1]} : vector<32x1xi32> to vector<24x1xi32>
    %3 = tpu.iota {dimensions = array<i32: 1>} : vector<24x32xi32>
    %4 = vector.broadcast %2 : vector<24x1xi32> to vector<24x32xi32>
    %5 = arith.cmpi eq, %4, %3 : vector<24x32xi32>
    %6 = arith.extui %5 : vector<24x32xi1> to vector<24x32xi32>
    %7 = arith.sitofp %6 : vector<24x32xi32> to vector<24x32xf32>
    %c0_1 = arith.constant 0 : index
    %c0_2 = arith.constant 0 : index
    %8 = vector.load %arg1[%c0_1, %c0_2] : memref<32x96xf32, #tpu.memory_space<vmem>>, vector<32x96xf32>
    %cst = arith.constant dense<0.000000e+00> : vector<24x96xf32>
    %9 = tpu.matmul %7, %8, %cst {dimension_numbers = #tpu.dot_dimension_numbers<[1], [0], [0], [1], [0, 0, 1, 1], [], []>} : vector<24x32xf32>, vector<32x96xf32>, vector<24x96xf32> -> vector<24x96xf32>
    %10 = tpu.iota {dimensions = array<i32: 1>} : vector<8x16xi32>
    %11 = vector.broadcast %1 : vector<8x1xi32> to vector<8x16xi32>
    %12 = arith.cmpi eq, %11, %10 : vector<8x16xi32>
    %13 = arith.extui %12 : vector<8x16xi1> to vector<8x16xi32>
    %14 = arith.sitofp %13 : vector<8x16xi32> to vector<8x16xf32>
    %c0_3 = arith.constant 0 : index
    %c0_4 = arith.constant 0 : index
    %15 = vector.load %arg2[%c0_3, %c0_4] : memref<16x64xf32, #tpu.memory_space<vmem>>, vector<16x64xf32>
    %cst_5 = arith.constant dense<0.000000e+00> : vector<8x64xf32>
    %16 = tpu.matmul %14, %15, %cst_5 {dimension_numbers = #tpu.dot_dimension_numbers<[1], [0], [0], [1], [0, 0, 1, 1], [], []>} : vector<8x16xf32>, vector<16x64xf32>, vector<8x64xf32> -> vector<8x64xf32>
    %c0_6 = arith.constant 0 : index
    %c0_7 = arith.constant 0 : index
    %17 = vector.load %arg3[%c0_6, %c0_7] : memref<96x128xf32, #tpu.memory_space<vmem>>, vector<96x128xf32>
    %cst_8 = arith.constant dense<0.000000e+00> : vector<24x128xf32>
    %18 = tpu.matmul %9, %17, %cst_8 {dimension_numbers = #tpu.dot_dimension_numbers<[1], [0], [0], [1], [0, 0, 1, 1], [], []>} : vector<24x96xf32>, vector<96x128xf32>, vector<24x128xf32> -> vector<24x128xf32>
    %c0_9 = arith.constant 0 : index
    %c0_10 = arith.constant 0 : index
    %19 = vector.load %arg4[%c0_9, %c0_10] : memref<1x128xf32, #tpu.memory_space<vmem>>, vector<1x128xf32>
    %20 = vector.broadcast %19 : vector<1x128xf32> to vector<24x128xf32>
    %21 = arith.addf %18, %20 : vector<24x128xf32>
    %22 = arith.negf %21 : vector<24x128xf32>
    %23 = math.exp %22 : vector<24x128xf32>
    %cst_11 = arith.constant 1.000000e+00 : f32
    %24 = vector.broadcast %cst_11 : f32 to vector<24x128xf32>
    %25 = arith.addf %24, %23 : vector<24x128xf32>
    %26 = arith.divf %24, %25 : vector<24x128xf32>
    %27 = vector.extract_strided_slice %26 {offsets = [0, 0], sizes = [8, 128], strides = [1, 1]} : vector<24x128xf32> to vector<8x128xf32>
    %28 = arith.mulf %27, %27 : vector<8x128xf32>
    %cst_12 = arith.constant dense<0.000000e+00> : vector<128xf32>
    %29 = vector.multi_reduction <add>, %28, %cst_12 [0] : vector<8x128xf32> to vector<128xf32>
    %30 = vector.shape_cast %29 : vector<128xf32> to vector<1x128xf32>
    %cst_13 = arith.constant 1.000000e-24 : f32
    %31 = vector.broadcast %cst_13 : f32 to vector<1x128xf32>
    %32 = arith.maximumf %30, %31 : vector<1x128xf32>
    %33 = math.rsqrt %32 : vector<1x128xf32>
    %34 = vector.broadcast %33 : vector<1x128xf32> to vector<8x128xf32>
    %35 = arith.mulf %27, %34 : vector<8x128xf32>
    %36 = vector.extract_strided_slice %26 {offsets = [8, 0], sizes = [8, 128], strides = [1, 1]} : vector<24x128xf32> to vector<8x128xf32>
    %37 = arith.mulf %36, %36 : vector<8x128xf32>
    %cst_14 = arith.constant dense<0.000000e+00> : vector<128xf32>
    %38 = vector.multi_reduction <add>, %37, %cst_14 [0] : vector<8x128xf32> to vector<128xf32>
    %39 = vector.shape_cast %38 : vector<128xf32> to vector<1x128xf32>
    %cst_15 = arith.constant 1.000000e-24 : f32
    %40 = vector.broadcast %cst_15 : f32 to vector<1x128xf32>
    %41 = arith.maximumf %39, %40 : vector<1x128xf32>
    %42 = math.rsqrt %41 : vector<1x128xf32>
    %43 = vector.broadcast %42 : vector<1x128xf32> to vector<8x128xf32>
    %44 = arith.mulf %36, %43 : vector<8x128xf32>
    %45 = vector.extract_strided_slice %26 {offsets = [16, 0], sizes = [8, 128], strides = [1, 1]} : vector<24x128xf32> to vector<8x128xf32>
    %46 = arith.mulf %45, %45 : vector<8x128xf32>
    %cst_16 = arith.constant dense<0.000000e+00> : vector<128xf32>
    %47 = vector.multi_reduction <add>, %46, %cst_16 [0] : vector<8x128xf32> to vector<128xf32>
    %48 = vector.shape_cast %47 : vector<128xf32> to vector<1x128xf32>
    %cst_17 = arith.constant 1.000000e-24 : f32
    %49 = vector.broadcast %cst_17 : f32 to vector<1x128xf32>
    %50 = arith.maximumf %48, %49 : vector<1x128xf32>
    %51 = math.rsqrt %50 : vector<1x128xf32>
    %52 = vector.broadcast %51 : vector<1x128xf32> to vector<8x128xf32>
    %53 = arith.mulf %45, %52 : vector<8x128xf32>
    %54 = arith.mulf %16, %16 : vector<8x64xf32>
    %cst_18 = arith.constant dense<0.000000e+00> : vector<64xf32>
    %55 = vector.multi_reduction <add>, %54, %cst_18 [0] : vector<8x64xf32> to vector<64xf32>
    %56 = vector.shape_cast %55 : vector<64xf32> to vector<1x64xf32>
    %cst_19 = arith.constant 1.000000e-24 : f32
    %57 = vector.broadcast %cst_19 : f32 to vector<1x64xf32>
    %58 = arith.maximumf %56, %57 : vector<1x64xf32>
    %59 = math.rsqrt %58 : vector<1x64xf32>
    %60 = vector.broadcast %59 : vector<1x64xf32> to vector<8x64xf32>
    %61 = arith.mulf %16, %60 : vector<8x64xf32>
    %62 = vector.extract_strided_slice %35 {offsets = [0, 0], sizes = [8, 32], strides = [1, 1]} : vector<8x128xf32> to vector<8x32xf32>
    %63 = vector.extract_strided_slice %61 {offsets = [0, 0], sizes = [8, 32], strides = [1, 1]} : vector<8x64xf32> to vector<8x32xf32>
    %64 = vector.extract_strided_slice %35 {offsets = [0, 64], sizes = [8, 32], strides = [1, 1]} : vector<8x128xf32> to vector<8x32xf32>
    %65 = vector.extract_strided_slice %61 {offsets = [0, 32], sizes = [8, 32], strides = [1, 1]} : vector<8x64xf32> to vector<8x32xf32>
    %66 = arith.mulf %62, %62 : vector<8x32xf32>
    %cst_20 = arith.constant dense<0.000000e+00> : vector<8xf32>
    %67 = vector.multi_reduction <add>, %66, %cst_20 [1] : vector<8x32xf32> to vector<8xf32>
    %68 = vector.shape_cast %67 : vector<8xf32> to vector<8x1xf32>
    %69 = arith.mulf %63, %63 : vector<8x32xf32>
    %cst_21 = arith.constant dense<0.000000e+00> : vector<8xf32>
    %70 = vector.multi_reduction <add>, %69, %cst_21 [1] : vector<8x32xf32> to vector<8xf32>
    %71 = vector.shape_cast %70 : vector<8xf32> to vector<8x1xf32>
    %72 = arith.mulf %64, %64 : vector<8x32xf32>
    %cst_22 = arith.constant dense<0.000000e+00> : vector<8xf32>
    %73 = vector.multi_reduction <add>, %72, %cst_22 [1] : vector<8x32xf32> to vector<8xf32>
    %74 = vector.shape_cast %73 : vector<8xf32> to vector<8x1xf32>
    %75 = arith.mulf %65, %65 : vector<8x32xf32>
    %cst_23 = arith.constant dense<0.000000e+00> : vector<8xf32>
    %76 = vector.multi_reduction <add>, %75, %cst_23 [1] : vector<8x32xf32> to vector<8xf32>
    %77 = vector.shape_cast %76 : vector<8xf32> to vector<8x1xf32>
    %78 = vector.extract_strided_slice %44 {offsets = [0, 0], sizes = [8, 32], strides = [1, 1]} : vector<8x128xf32> to vector<8x32xf32>
    %79 = arith.mulf %62, %78 : vector<8x32xf32>
    %cst_24 = arith.constant dense<0.000000e+00> : vector<8xf32>
    %80 = vector.multi_reduction <add>, %79, %cst_24 [1] : vector<8x32xf32> to vector<8xf32>
    %81 = vector.shape_cast %80 : vector<8xf32> to vector<8x1xf32>
    %82 = arith.mulf %78, %78 : vector<8x32xf32>
    %cst_25 = arith.constant dense<0.000000e+00> : vector<8xf32>
    %83 = vector.multi_reduction <add>, %82, %cst_25 [1] : vector<8x32xf32> to vector<8xf32>
    %84 = vector.shape_cast %83 : vector<8xf32> to vector<8x1xf32>
    %85 = arith.mulf %68, %84 : vector<8x1xf32>
    %cst_26 = arith.constant 1.000000e-16 : f32
    %86 = vector.broadcast %cst_26 : f32 to vector<8x1xf32>
    %87 = arith.maximumf %85, %86 : vector<8x1xf32>
    %88 = math.rsqrt %87 : vector<8x1xf32>
    %89 = arith.mulf %81, %88 : vector<8x1xf32>
    %90 = vector.extract_strided_slice %44 {offsets = [0, 32], sizes = [8, 32], strides = [1, 1]} : vector<8x128xf32> to vector<8x32xf32>
    %91 = arith.mulf %63, %90 : vector<8x32xf32>
    %cst_27 = arith.constant dense<0.000000e+00> : vector<8xf32>
    %92 = vector.multi_reduction <add>, %91, %cst_27 [1] : vector<8x32xf32> to vector<8xf32>
    %93 = vector.shape_cast %92 : vector<8xf32> to vector<8x1xf32>
    %94 = arith.mulf %90, %90 : vector<8x32xf32>
    %cst_28 = arith.constant dense<0.000000e+00> : vector<8xf32>
    %95 = vector.multi_reduction <add>, %94, %cst_28 [1] : vector<8x32xf32> to vector<8xf32>
    %96 = vector.shape_cast %95 : vector<8xf32> to vector<8x1xf32>
    %97 = arith.mulf %71, %96 : vector<8x1xf32>
    %cst_29 = arith.constant 1.000000e-16 : f32
    %98 = vector.broadcast %cst_29 : f32 to vector<8x1xf32>
    %99 = arith.maximumf %97, %98 : vector<8x1xf32>
    %100 = math.rsqrt %99 : vector<8x1xf32>
    %101 = arith.mulf %93, %100 : vector<8x1xf32>
    %102 = vector.extract_strided_slice %44 {offsets = [0, 64], sizes = [8, 32], strides = [1, 1]} : vector<8x128xf32> to vector<8x32xf32>
    %103 = arith.mulf %64, %102 : vector<8x32xf32>
    %cst_30 = arith.constant dense<0.000000e+00> : vector<8xf32>
    %104 = vector.multi_reduction <add>, %103, %cst_30 [1] : vector<8x32xf32> to vector<8xf32>
    %105 = vector.shape_cast %104 : vector<8xf32> to vector<8x1xf32>
    %106 = arith.mulf %102, %102 : vector<8x32xf32>
    %cst_31 = arith.constant dense<0.000000e+00> : vector<8xf32>
    %107 = vector.multi_reduction <add>, %106, %cst_31 [1] : vector<8x32xf32> to vector<8xf32>
    %108 = vector.shape_cast %107 : vector<8xf32> to vector<8x1xf32>
    %109 = arith.mulf %74, %108 : vector<8x1xf32>
    %cst_32 = arith.constant 1.000000e-16 : f32
    %110 = vector.broadcast %cst_32 : f32 to vector<8x1xf32>
    %111 = arith.maximumf %109, %110 : vector<8x1xf32>
    %112 = math.rsqrt %111 : vector<8x1xf32>
    %113 = arith.mulf %105, %112 : vector<8x1xf32>
    %114 = vector.extract_strided_slice %44 {offsets = [0, 96], sizes = [8, 32], strides = [1, 1]} : vector<8x128xf32> to vector<8x32xf32>
    %115 = arith.mulf %65, %114 : vector<8x32xf32>
    %cst_33 = arith.constant dense<0.000000e+00> : vector<8xf32>
    %116 = vector.multi_reduction <add>, %115, %cst_33 [1] : vector<8x32xf32> to vector<8xf32>
    %117 = vector.shape_cast %116 : vector<8xf32> to vector<8x1xf32>
    %118 = arith.mulf %114, %114 : vector<8x32xf32>
    %cst_34 = arith.constant dense<0.000000e+00> : vector<8xf32>
    %119 = vector.multi_reduction <add>, %118, %cst_34 [1] : vector<8x32xf32> to vector<8xf32>
    %120 = vector.shape_cast %119 : vector<8xf32> to vector<8x1xf32>
    %121 = arith.mulf %77, %120 : vector<8x1xf32>
    %cst_35 = arith.constant 1.000000e-16 : f32
    %122 = vector.broadcast %cst_35 : f32 to vector<8x1xf32>
    %123 = arith.maximumf %121, %122 : vector<8x1xf32>
    %124 = math.rsqrt %123 : vector<8x1xf32>
    %125 = arith.mulf %117, %124 : vector<8x1xf32>
    %126 = vector.extract_strided_slice %53 {offsets = [0, 0], sizes = [8, 32], strides = [1, 1]} : vector<8x128xf32> to vector<8x32xf32>
    %127 = arith.mulf %62, %126 : vector<8x32xf32>
    %cst_36 = arith.constant dense<0.000000e+00> : vector<8xf32>
    %128 = vector.multi_reduction <add>, %127, %cst_36 [1] : vector<8x32xf32> to vector<8xf32>
    %129 = vector.shape_cast %128 : vector<8xf32> to vector<8x1xf32>
    %130 = arith.mulf %126, %126 : vector<8x32xf32>
    %cst_37 = arith.constant dense<0.000000e+00> : vector<8xf32>
    %131 = vector.multi_reduction <add>, %130, %cst_37 [1] : vector<8x32xf32> to vector<8xf32>
    %132 = vector.shape_cast %131 : vector<8xf32> to vector<8x1xf32>
    %133 = arith.mulf %68, %132 : vector<8x1xf32>
    %cst_38 = arith.constant 1.000000e-16 : f32
    %134 = vector.broadcast %cst_38 : f32 to vector<8x1xf32>
    %135 = arith.maximumf %133, %134 : vector<8x1xf32>
    %136 = math.rsqrt %135 : vector<8x1xf32>
    %137 = arith.mulf %129, %136 : vector<8x1xf32>
    %138 = vector.extract_strided_slice %53 {offsets = [0, 32], sizes = [8, 32], strides = [1, 1]} : vector<8x128xf32> to vector<8x32xf32>
    %139 = arith.mulf %63, %138 : vector<8x32xf32>
    %cst_39 = arith.constant dense<0.000000e+00> : vector<8xf32>
    %140 = vector.multi_reduction <add>, %139, %cst_39 [1] : vector<8x32xf32> to vector<8xf32>
    %141 = vector.shape_cast %140 : vector<8xf32> to vector<8x1xf32>
    %142 = arith.mulf %138, %138 : vector<8x32xf32>
    %cst_40 = arith.constant dense<0.000000e+00> : vector<8xf32>
    %143 = vector.multi_reduction <add>, %142, %cst_40 [1] : vector<8x32xf32> to vector<8xf32>
    %144 = vector.shape_cast %143 : vector<8xf32> to vector<8x1xf32>
    %145 = arith.mulf %71, %144 : vector<8x1xf32>
    %cst_41 = arith.constant 1.000000e-16 : f32
    %146 = vector.broadcast %cst_41 : f32 to vector<8x1xf32>
    %147 = arith.maximumf %145, %146 : vector<8x1xf32>
    %148 = math.rsqrt %147 : vector<8x1xf32>
    %149 = arith.mulf %141, %148 : vector<8x1xf32>
    %150 = vector.extract_strided_slice %53 {offsets = [0, 64], sizes = [8, 32], strides = [1, 1]} : vector<8x128xf32> to vector<8x32xf32>
    %151 = arith.mulf %64, %150 : vector<8x32xf32>
    %cst_42 = arith.constant dense<0.000000e+00> : vector<8xf32>
    %152 = vector.multi_reduction <add>, %151, %cst_42 [1] : vector<8x32xf32> to vector<8xf32>
    %153 = vector.shape_cast %152 : vector<8xf32> to vector<8x1xf32>
    %154 = arith.mulf %150, %150 : vector<8x32xf32>
    %cst_43 = arith.constant dense<0.000000e+00> : vector<8xf32>
    %155 = vector.multi_reduction <add>, %154, %cst_43 [1] : vector<8x32xf32> to vector<8xf32>
    %156 = vector.shape_cast %155 : vector<8xf32> to vector<8x1xf32>
    %157 = arith.mulf %74, %156 : vector<8x1xf32>
    %cst_44 = arith.constant 1.000000e-16 : f32
    %158 = vector.broadcast %cst_44 : f32 to vector<8x1xf32>
    %159 = arith.maximumf %157, %158 : vector<8x1xf32>
    %160 = math.rsqrt %159 : vector<8x1xf32>
    %161 = arith.mulf %153, %160 : vector<8x1xf32>
    %162 = vector.extract_strided_slice %53 {offsets = [0, 96], sizes = [8, 32], strides = [1, 1]} : vector<8x128xf32> to vector<8x32xf32>
    %163 = arith.mulf %65, %162 : vector<8x32xf32>
    %cst_45 = arith.constant dense<0.000000e+00> : vector<8xf32>
    %164 = vector.multi_reduction <add>, %163, %cst_45 [1] : vector<8x32xf32> to vector<8xf32>
    %165 = vector.shape_cast %164 : vector<8xf32> to vector<8x1xf32>
    %166 = arith.mulf %162, %162 : vector<8x32xf32>
    %cst_46 = arith.constant dense<0.000000e+00> : vector<8xf32>
    %167 = vector.multi_reduction <add>, %166, %cst_46 [1] : vector<8x32xf32> to vector<8xf32>
    %168 = vector.shape_cast %167 : vector<8xf32> to vector<8x1xf32>
    %169 = arith.mulf %77, %168 : vector<8x1xf32>
    %cst_47 = arith.constant 1.000000e-16 : f32
    %170 = vector.broadcast %cst_47 : f32 to vector<8x1xf32>
    %171 = arith.maximumf %169, %170 : vector<8x1xf32>
    %172 = math.rsqrt %171 : vector<8x1xf32>
    %173 = arith.mulf %165, %172 : vector<8x1xf32>
    %174 = arith.addf %89, %113 : vector<8x1xf32>
    %cst_48 = arith.constant 5.000000e-01 : f32
    %175 = vector.broadcast %cst_48 : f32 to vector<8x1xf32>
    %176 = arith.mulf %175, %174 : vector<8x1xf32>
    %177 = arith.addf %137, %161 : vector<8x1xf32>
    %cst_49 = arith.constant 5.000000e-01 : f32
    %178 = vector.broadcast %cst_49 : f32 to vector<8x1xf32>
    %179 = arith.mulf %178, %177 : vector<8x1xf32>
    %180 = arith.addf %101, %125 : vector<8x1xf32>
    %181 = arith.addf %149, %173 : vector<8x1xf32>
    %cst_50 = arith.constant 6.000000e-01 : f32
    %182 = vector.broadcast %cst_50 : f32 to vector<8x1xf32>
    %183 = arith.mulf %182, %176 : vector<8x1xf32>
    %cst_51 = arith.constant 4.000000e-01 : f32
    %184 = vector.broadcast %cst_51 : f32 to vector<8x1xf32>
    %185 = arith.mulf %184, %180 : vector<8x1xf32>
    %186 = arith.addf %183, %185 : vector<8x1xf32>
    %cst_52 = arith.constant 6.000000e-01 : f32
    %187 = vector.broadcast %cst_52 : f32 to vector<8x1xf32>
    %188 = arith.mulf %187, %179 : vector<8x1xf32>
    %cst_53 = arith.constant 4.000000e-01 : f32
    %189 = vector.broadcast %cst_53 : f32 to vector<8x1xf32>
    %190 = arith.mulf %189, %181 : vector<8x1xf32>
    %191 = arith.addf %188, %190 : vector<8x1xf32>
    %192 = arith.subf %186, %191 : vector<8x1xf32>
    %193 = vector.shape_cast %192 : vector<8x1xf32> to vector<8x1xf32>
    %194 = vector.broadcast %193 : vector<8x1xf32> to vector<8x128xf32>
    %c0_54 = arith.constant 0 : index
    %c0_55 = arith.constant 0 : index
    %195 = vector.load %arg5[%c0_54, %c0_55] : memref<8x128xf32, #tpu.memory_space<vmem>>, vector<8x128xf32>
    tpu.vector_store %arg5[%c0_54, %c0_55], %194 {strides = array<i32>} : memref<8x128xf32, #tpu.memory_space<vmem>>, vector<8x128xf32>,
    return
  }
}

</mosaic_0001>

<llo_original>
// kernel: gpbpr_forward.1
$region0: #{gpbpr_forward.1}
  #allocation0 [shape = 'u32[]', space=smem, size = 0x4, offset = 0x4, fixed_abs, tag = 'smem constant byte address 0x4 - core index']
  #allocation1 [shape = 'u32[72,128]{1,0:T(1,128)}', space=vmem, size = 0x9000, scoped, tag = 'internal scratch']
  %s0 = inlined_call_operand.vmem [shape: s32[32,1], index: 0, kind: input, shape index: {}]
  %s1 = inlined_call_operand.vmem [shape: f32[32,96], index: 1, kind: input, shape index: {}]
  %s2 = inlined_call_operand.hbm [shape: f32[16,64], index: 2, kind: input, shape index: {}]
  %s3 = inlined_call_operand.hbm [shape: f32[96,128], index: 3, kind: input, shape index: {}]
  %s4 = inlined_call_operand.vmem [shape: f32[1,128], index: 4, kind: input, shape index: {}]
  %s5 = inlined_call_operand.vmem [shape: f32[8,128], index: 5, kind: output, shape index: {}]
  %s6 = sld [smem:[#allocation0]]
  $region38: #{gpbpr_forward.1} parent=0
    _
  %s8 = ssub.s32 1, %s6
  %s9 = scalar_select 0, %s8, %s6
  $region1: #{gpbpr_forward.1} parent=0
    #allocation2 [shape = 'u8[8192]{0}', space=vmem, size = 0x2000, scoped, tag = 'input window, operand 2, single buffered']
    #allocation3 [shape = 's32[1]{0}', space=sflag, size = 0x4, scoped, tag = 'scoped memory for gpbpr_forward.1']
    #allocation4 [shape = 'u8[49152]{0}', space=vmem, size = 0xc000, scoped, tag = 'input window, operand 3, single buffered']
    #allocation5 [shape = 's32[1]{0}', space=sflag, size = 0x4, scoped, tag = 'scoped memory for gpbpr_forward.1']
    %10 = vsyncpa [#allocation3], 0
    %11 = vsyncpa [#allocation5], 0
    // Predicated region
    $region2: #{gpbpr_forward.1} parent=1 // pred_check
      _
    $region3: #{gpbpr_forward.1} parent=1 // pred_check_branch
      %13 = sbr.rel (0) target = $region5
    $region4: #{gpbpr_forward.1} parent=1 // pred_region
      _
    $region5: #{gpbpr_forward.1} parent=1 // pred_fallthru
      _
    // Predicated region
    $region6: #{gpbpr_forward.1} parent=1 // pred_check
      _
    $region7: #{gpbpr_forward.1} parent=1 // pred_check_branch
      %15 = sbr.rel (0) target = $region9
    $region8: #{gpbpr_forward.1} parent=1 // pred_region
      _
    $region9: #{gpbpr_forward.1} parent=1 // pred_fallthru
      _
    // Predicated region
    $region10: #{gpbpr_forward.1} parent=1 // pred_check
      _
    $region11: #{gpbpr_forward.1} parent=1 // pred_check_branch
      %17 = sbr.rel (0) target = $region13
    $region12: #{gpbpr_forward.1} parent=1 // pred_region
      %19 = vsyncadd [#allocation3], 0
      %s20 = sshll.u32 %s2, 4
      %s21 = int_to_ptr.hbm [resolvable:$true] %s20
      %s22 = sshll.u32 [#allocation2], 4
      %s23 = int_to_ptr.vmem [resolvable:$true] %s22
      %28 = dma.hbm_to_vmem [thread:$0]  %s21, 256, %s23, [#allocation3], 128, 128, 8
    $region13: #{gpbpr_forward.1} parent=1 // pred_fallthru
      _
    // Predicated region
    $region14: #{gpbpr_forward.1} parent=1 // pred_check
      _
    $region15: #{gpbpr_forward.1} parent=1 // pred_check_branch
      %30 = sbr.rel (0) target = $region17
    $region16: #{gpbpr_forward.1} parent=1 // pred_region
      %32 = vsyncadd [#allocation5], 0
      %s33 = sshll.u32 %s3, 4
      %s34 = int_to_ptr.hbm [resolvable:$true] %s33
      %s35 = sshll.u32 [#allocation4], 4
      %s36 = int_to_ptr.vmem [resolvable:$true] %s35
      %41 = dma.hbm_to_vmem [thread:$0]  %s34, 1536, %s36, [#allocation5], 128, 128, 8
    $region17: #{gpbpr_forward.1} parent=1 // pred_fallthru
      _
    // Predicated region
    $region18: #{gpbpr_forward.1} parent=1 // pred_check
      _
    $region19: #{gpbpr_forward.1} parent=1 // pred_check_branch
      %43 = sbr.rel (0) target = $region21
    $region20: #{gpbpr_forward.1} parent=1 // pred_region
      _
    $region21: #{gpbpr_forward.1} parent=1 // pred_fallthru
      _
    // Predicated region
    $region22: #{gpbpr_forward.1} parent=1 // pred_check
      _
    $region23: #{gpbpr_forward.1} parent=1 // pred_check_branch
      %45 = sbr.rel (0) target = $region25
    $region24: #{gpbpr_forward.1} parent=1 // pred_region
      %47 = dma.done [#allocation3], 256
    $region25: #{gpbpr_forward.1} parent=1 // pred_fallthru
      _
    // Predicated region
    $region26: #{gpbpr_forward.1} parent=1 // pred_check
      _
    $region27: #{gpbpr_forward.1} parent=1 // pred_check_branch
      %49 = sbr.rel (0) target = $region29
    $region28: #{gpbpr_forward.1} parent=1 // pred_region
      %51 = dma.done [#allocation5], 1536
    $region29: #{gpbpr_forward.1} parent=1 // pred_fallthru
      _
    %v52 = vld [vmem:[%s0] sm:$0xff]
    %v53 = vld [vmem:[%s0 + $0x8] sm:$0xff]
    %v54 = vld [vmem:[%s0 + $0x10] sm:$0xff]
    %v55 = vld [vmem:[%s0 + $0x18] sm:$0xff]
    %v56 = vlaneseq
    %v57 = vand.u32 %v56, 127
    %58 = vset.pattern.permute.xlu0 0
    %59 = vperm.xlu0 %58, %v53
    %v60 = vpop.permute.xlu0 %59
    %61 = vset.pattern.permute.xlu0 0
    %62 = vperm.xlu0 %61, %v54
    %v63 = vpop.permute.xlu0 %62
    %64 = vset.pattern.permute.xlu0 0
    %65 = vperm.xlu0 %64, %v55
    %v66 = vpop.permute.xlu0 %65
    %vm67 = vcmp.eq.s32.totalorder %v60, %v57
    %vm68 = vcmp.eq.s32.totalorder %v63, %v57
    %vm69 = vcmp.eq.s32.totalorder %v66, %v57
    %v70 = vsel %vm67, 1, 0
    %v71 = vsel %vm68, 1, 0
    %v72 = vsel %vm69, 1, 0
    %v73 = vcvt.s32.f32 %v70
    %v74 = vcvt.s32.f32 %v71
    %v75 = vcvt.s32.f32 %v72
    %v76 = vld [vmem:[%s1] sm:$0xff]
    %v77 = vld [vmem:[%s1 + $0x8] sm:$0xff]
    %v78 = vld [vmem:[%s1 + $0x10] sm:$0xff]
    %v79 = vld [vmem:[%s1 + $0x18] sm:$0xff]
    %vm80 = vcmask 261120
    %v82 = vsel %vm80, %v73, 0
    %v85 = vsel %vm80, %v74, 0
    %v88 = vsel %vm80, %v75, 0
    %90 = vmatpush.msra.mxu0 0.0
    %91 = vmatpush.msra.mxu0 0.0
    %92 = vmatpush.msra.mxu0 0.0
    %93 = vmatpush.msra.mxu0 0.0
    %94 = vmatpush.msra.mxu0 0.0
    %95 = vmatpush.msra.mxu0 0.0
    %96 = vmatpush.msra.mxu0 0.0
    %97 = vmatpush.msra.mxu0 0.0
    %98 = vmatpush.msra.mxu0 0.0
    %99 = vmatpush.msra.mxu0 0.0
    %100 = vmatpush.msra.mxu0 0.0
    %101 = vmatpush.msra.mxu0 0.0
    %102 = vmatpush.msra.mxu0 %v79
    %103 = vmatpush.msra.mxu0 %v78
    %104 = vmatpush.msra.mxu0 %v77
    %105 = vmatpush.msra.mxu0 %v76
    %106 = vmatmul.f32.gmra.mxu0 %v82
    %v107 = vpop.f32.mrf.mxu0
    %v108 = vadd.f32 0.0, %v107
    %109 = vmatmul.f32.gmra.mxu0 %v85
    %v110 = vpop.f32.mrf.mxu0
    %v111 = vadd.f32 0.0, %v110
    %112 = vmatmul.f32.gmra.mxu0 %v88
    %v113 = vpop.f32.mrf.mxu0
    %v114 = vadd.f32 0.0, %v113
    %115 = vdwg.mxu0
    %116 = vset.pattern.permute.xlu0 0
    %117 = vperm.xlu0 %116, %v52
    %v118 = vpop.permute.xlu0 %117
    %vm119 = vcmp.eq.s32.totalorder %v118, %v57
    %v120 = vsel %vm119, 1, 0
    %v121 = vcvt.s32.f32 %v120
    %v122 = vld [vmem:[#allocation2] sm:$0xff]
    %v123 = vld [vmem:[#allocation2 + $0x8] sm:$0xff]
    %vm124 = vcmask 130048
    %v126 = vsel %vm124, %v121, 0
    %128 = vmatpush.msra.mxu0 0.0
    %129 = vmatpush.msra.mxu0 0.0
    %130 = vmatpush.msra.mxu0 0.0
    %131 = vmatpush.msra.mxu0 0.0
    %132 = vmatpush.msra.mxu0 0.0
    %133 = vmatpush.msra.mxu0 0.0
    %134 = vmatpush.msra.mxu0 0.0
    %135 = vmatpush.msra.mxu0 0.0
    %136 = vmatpush.msra.mxu0 0.0
    %137 = vmatpush.msra.mxu0 0.0
    %138 = vmatpush.msra.mxu0 0.0
    %139 = vmatpush.msra.mxu0 0.0
    %140 = vmatpush.msra.mxu0 0.0
    %141 = vmatpush.msra.mxu0 0.0
    %142 = vmatpush.msra.mxu0 %v123
    %143 = vmatpush.msra.mxu0 %v122
    %144 = vmatmul.f32.gmra.mxu0 %v126
    %v145 = vpop.f32.mrf.mxu0
    %v146 = vadd.f32 0.0, %v145
    %147 = vdwg.mxu0
    %v148 = vld [vmem:[#allocation4] sm:$0xff]
    %v149 = vld [vmem:[#allocation4 + $0x8] sm:$0xff]
    %v150 = vld [vmem:[#allocation4 + $0x10] sm:$0xff]
    %v151 = vld [vmem:[#allocation4 + $0x18] sm:$0xff]
    %v152 = vld [vmem:[#allocation4 + $0x20] sm:$0xff]
    %v153 = vld [vmem:[#allocation4 + $0x28] sm:$0xff]
    %v154 = vld [vmem:[#allocation4 + $0x30] sm:$0xff]
    %v155 = vld [vmem:[#allocation4 + $0x38] sm:$0xff]
    %v156 = vld [vmem:[#allocation4 + $0x40] sm:$0xff]
    %v157 = vld [vmem:[#allocation4 + $0x48] sm:$0xff]
    %v158 = vld [vmem:[#allocation4 + $0x50] sm:$0xff]
    %v159 = vld [vmem:[#allocation4 + $0x58] sm:$0xff]
    %v160 = vld [vmem:[%s4] sm:$0x1]
    %v162 = vperm.slane %v160, 0
    %vm164 = vcmask 785408
    %v166 = vsel %vm164, %v108, 0
    %v169 = vsel %vm164, %v111, 0
    %v172 = vsel %vm164, %v114, 0
    %174 = vmatpush.msra.mxu0 0.0
    %175 = vmatpush.msra.mxu0 0.0
    %176 = vmatpush.msra.mxu0 0.0
    %177 = vmatpush.msra.mxu0 0.0
    %178 = vmatpush.msra.mxu0 %v159
    %179 = vmatpush.msra.mxu0 %v158
    %180 = vmatpush.msra.mxu0 %v157
    %181 = vmatpush.msra.mxu0 %v156
    %182 = vmatpush.msra.mxu0 %v155
    %183 = vmatpush.msra.mxu0 %v154
    %184 = vmatpush.msra.mxu0 %v153
    %185 = vmatpush.msra.mxu0 %v152
    %186 = vmatpush.msra.mxu0 %v151
    %187 = vmatpush.msra.mxu0 %v150
    %188 = vmatpush.msra.mxu0 %v149
    %189 = vmatpush.msra.mxu0 %v148
    %190 = vmatmul.f32.gmra.mxu0 %v166
    %v191 = vpop.f32.mrf.mxu0
    %v192 = vadd.f32 %v162, %v191
    %193 = vmatmul.f32.gmra.mxu0 %v169
    %v194 = vpop.f32.mrf.mxu0
    %v195 = vadd.f32 %v162, %v194
    %196 = vmatmul.f32.gmra.mxu0 %v172
    %v197 = vpop.f32.mrf.mxu0
    %v198 = vadd.f32 %v162, %v197
    %199 = vdwg.mxu0
    %v200 = vxor.u32 %v192, 2147483648
    %v201 = vxor.u32 %v195, 2147483648
    %v202 = vxor.u32 %v198, 2147483648
    %v203 = vmul.f32 %v200, 1.442695
    %v204 = vpow.pop %v203
    %v205 = vmul.f32 %v201, 1.442695
    %v206 = vpow.pop %v205
    %v207 = vmul.f32 %v202, 1.442695
    %v208 = vpow.pop %v207
    %v209 = vadd.f32 %v204, 1.0
    %v210 = vadd.f32 %v206, 1.0
    %v211 = vadd.f32 %v208, 1.0
    %v212 = vrcp.pop %v209
    %v213 = vmul.f32 %v209, %v212
    %v214 = vsub.f32 1.0, %v213
    %v215 = vmul.f32 %v212, %v214
    %v216 = vadd.f32 %v212, %v215
    %vm217 = vweird.f32 %v209
    %vm218 = vweird.f32 %v212
    %vm219 = vmor %vm217, %vm218
    %v220 = vsel %vm219, %v212, %v216
    %v221 = vand.u32 2147483647, %v209
    %vm222 = vcmp.eq.f32.partialorder %v221, 8.507059e+37
    %v223 = vand.u32 %v209, 2147483648
    %v224 = vor.u32 1.1754944e-38, %v223
    %v225 = vsel %vm222, %v224, %v220
    %v226 = vmul.f32 1.0, %v225
    %v227 = vrcp.pop %v210
    %v228 = vmul.f32 %v210, %v227
    %v229 = vsub.f32 1.0, %v228
    %v230 = vmul.f32 %v227, %v229
    %v231 = vadd.f32 %v227, %v230
    %vm232 = vweird.f32 %v210
    %vm233 = vweird.f32 %v227
    %vm234 = vmor %vm232, %vm233
    %v235 = vsel %vm234, %v227, %v231
    %v236 = vand.u32 2147483647, %v210
    %vm237 = vcmp.eq.f32.partialorder %v236, 8.507059e+37
    %v238 = vand.u32 %v210, 2147483648
    %v239 = vor.u32 1.1754944e-38, %v238
    %v240 = vsel %vm237, %v239, %v235
    %v241 = vmul.f32 1.0, %v240
    %v242 = vrcp.pop %v211
    %v243 = vmul.f32 %v211, %v242
    %v244 = vsub.f32 1.0, %v243
    %v245 = vmul.f32 %v242, %v244
    %v246 = vadd.f32 %v242, %v245
    %vm247 = vweird.f32 %v211
    %vm248 = vweird.f32 %v242
    %vm249 = vmor %vm247, %vm248
    %v250 = vsel %vm249, %v242, %v246
    %v251 = vand.u32 2147483647, %v211
    %vm252 = vcmp.eq.f32.partialorder %v251, 8.507059e+37
    %v253 = vand.u32 %v211, 2147483648
    %v254 = vor.u32 1.1754944e-38, %v253
    %v255 = vsel %vm252, %v254, %v250
    %v256 = vmul.f32 1.0, %v255
    %v257 = vmul.f32 %v226, %v226
    %v258 = vrot.slane %v257, 4
    %v259 = vadd.f32 %v257, %v258
    %v260 = vrot.slane %v259, 2
    %v261 = vadd.f32 %v259, %v260
    %v262 = vrot.slane %v261, 1
    %v263 = vadd.f32 %v261, %v262
    %v264 = vmax.f32 %v263, 1e-24
    %v265 = vrsqrt.pop %v264
    %v266 = vmul.f32 %v265, %v264
    %v267 = vmul.f32 %v266, %v265
    %v268 = vmul.f32 0.5, %v267
    %v269 = vsub.f32 1.5, %v268
    %v270 = vmul.f32 %v265, %v269
    %vm271 = vweird.f32 %v264
    %vm272 = vweird.f32 %v265
    %vm273 = vmor %vm271, %vm272
    %v274 = vsel %vm273, %v265, %v270
    %v275 = vmul.f32 %v226, %v274
    %v276 = vmul.f32 %v241, %v241
    %v277 = vrot.slane %v276, 4
    %v278 = vadd.f32 %v276, %v277
    %v279 = vrot.slane %v278, 2
    %v280 = vadd.f32 %v278, %v279
    %v281 = vrot.slane %v280, 1
    %v282 = vadd.f32 %v280, %v281
    %v283 = vmax.f32 %v282, 1e-24
    %v284 = vrsqrt.pop %v283
    %v285 = vmul.f32 %v284, %v283
    %v286 = vmul.f32 %v285, %v284
    %v287 = vmul.f32 0.5, %v286
    %v288 = vsub.f32 1.5, %v287
    %v289 = vmul.f32 %v284, %v288
    %vm290 = vweird.f32 %v283
    %vm291 = vweird.f32 %v284
    %vm292 = vmor %vm290, %vm291
    %v293 = vsel %vm292, %v284, %v289
    %v294 = vmul.f32 %v241, %v293
    %v295 = vmul.f32 %v256, %v256
    %v296 = vrot.slane %v295, 4
    %v297 = vadd.f32 %v295, %v296
    %v298 = vrot.slane %v297, 2
    %v299 = vadd.f32 %v297, %v298
    %v300 = vrot.slane %v299, 1
    %v301 = vadd.f32 %v299, %v300
    %v302 = vmax.f32 %v301, 1e-24
    %v303 = vrsqrt.pop %v302
    %v304 = vmul.f32 %v303, %v302
    %v305 = vmul.f32 %v304, %v303
    %v306 = vmul.f32 0.5, %v305
    %v307 = vsub.f32 1.5, %v306
    %v308 = vmul.f32 %v303, %v307
    %vm309 = vweird.f32 %v302
    %vm310 = vweird.f32 %v303
    %vm311 = vmor %vm309, %vm310
    %v312 = vsel %vm311, %v303, %v308
    %v313 = vmul.f32 %v256, %v312
    %v314 = vmul.f32 %v146, %v146
    %vm315 = vcmask 523264
    %v316 = vsel %vm315, %v314, 0.0
    %v317 = vrot.slane %v316, 4
    %v318 = vadd.f32 %v316, %v317
    %v319 = vrot.slane %v318, 2
    %v320 = vadd.f32 %v318, %v319
    %v321 = vrot.slane %v320, 1
    %v322 = vadd.f32 %v320, %v321
    %v323 = vmax.f32 %v322, 1e-24
    %v324 = vrsqrt.pop %v323
    %v325 = vmul.f32 %v324, %v323
    %v326 = vmul.f32 %v325, %v324
    %v327 = vmul.f32 0.5, %v326
    %v328 = vsub.f32 1.5, %v327
    %v329 = vmul.f32 %v324, %v328
    %vm330 = vweird.f32 %v323
    %vm331 = vweird.f32 %v324
    %vm332 = vmor %vm330, %vm331
    %v333 = vsel %vm332, %v324, %v329
    %v334 = vmul.f32 %v146, %v333
    %v335 = vmul.f32 %v275, %v275
    %v336 = vsel %vm80, %v335, 0.0
    %337 = vadd.xlane.f32.xlu0 %v336
    %v338 = vpop.xlane.xlu0 %337
    %v339 = vmul.f32 %v334, %v334
    %v340 = vsel %vm80, %v339, 0.0
    %341 = vadd.xlane.f32.xlu0 %v340
    %v342 = vpop.xlane.xlu0 %341
    %344 = vrot.lane.b32.xlu0 %v335, 64
    %v345 = vpop.permute.xlu0 %344
    %v347 = vsel %vm80, %v345, 0.0
    %348 = vadd.xlane.f32.xlu0 %v347
    %v349 = vpop.xlane.xlu0 %348
    %351 = vrot.lane.b32.xlu0 %v339, 96
    %v352 = vpop.permute.xlu0 %351
    %v354 = vsel %vm80, %v352, 0.0
    %355 = vadd.xlane.f32.xlu0 %v354
    %v356 = vpop.xlane.xlu0 %355
    %v357 = vmul.f32 %v275, %v294
    %v358 = vsel %vm80, %v357, 0.0
    %359 = vadd.xlane.f32.xlu0 %v358
    %v360 = vpop.xlane.xlu0 %359
    %v361 = vmul.f32 %v294, %v294
    %v362 = vsel %vm80, %v361, 0.0
    %363 = vadd.xlane.f32.xlu0 %v362
    %v364 = vpop.xlane.xlu0 %363
    %v365 = vmul.f32 %v338, %v364
    %v366 = vmax.f32 %v365, 1e-16
    %v367 = vrsqrt.pop %v366
    %v368 = vmul.f32 %v367, %v366
    %v369 = vmul.f32 %v368, %v367
    %v370 = vmul.f32 0.5, %v369
    %v371 = vsub.f32 1.5, %v370
    %v372 = vmul.f32 %v367, %v371
    %vm373 = vweird.f32 %v366
    %vm374 = vweird.f32 %v367
    %vm375 = vmor %vm373, %vm374
    %v376 = vsel %vm375, %v367, %v372
    %v377 = vmul.f32 %v360, %v376
    %379 = vrot.lane.b32.xlu0 %v294, 96
    %v380 = vpop.permute.xlu0 %379
    %v382 = vmul.f32 %v334, %v380
    %v383 = vsel %vm80, %v382, 0.0
    %384 = vadd.xlane.f32.xlu0 %v383
    %v385 = vpop.xlane.xlu0 %384
    %387 = vrot.lane.b32.xlu0 %v361, 96
    %v388 = vpop.permute.xlu0 %387
    %v390 = vsel %vm80, %v388, 0.0
    %391 = vadd.xlane.f32.xlu0 %v390
    %v392 = vpop.xlane.xlu0 %391
    %v393 = vmul.f32 %v342, %v392
    %v394 = vmax.f32 %v393, 1e-16
    %v395 = vrsqrt.pop %v394
    %v396 = vmul.f32 %v395, %v394
    %v397 = vmul.f32 %v396, %v395
    %v398 = vmul.f32 0.5, %v397
    %v399 = vsub.f32 1.5, %v398
    %v400 = vmul.f32 %v395, %v399
    %vm401 = vweird.f32 %v394
    %vm402 = vweird.f32 %v395
    %vm403 = vmor %vm401, %vm402
    %v404 = vsel %vm403, %v395, %v400
    %v405 = vmul.f32 %v385, %v404
    %407 = vrot.lane.b32.xlu0 %v357, 64
    %v408 = vpop.permute.xlu0 %407
    %v410 = vsel %vm80, %v408, 0.0
    %411 = vadd.xlane.f32.xlu0 %v410
    %v412 = vpop.xlane.xlu0 %411
    %413 = vrot.lane.b32.xlu0 %v361, 64
    %v414 = vpop.permute.xlu0 %413
    %v416 = vsel %vm80, %v414, 0.0
    %417 = vadd.xlane.f32.xlu0 %v416
    %v418 = vpop.xlane.xlu0 %417
    %v419 = vmul.f32 %v349, %v418
    %v420 = vmax.f32 %v419, 1e-16
    %v421 = vrsqrt.pop %v420
    %v422 = vmul.f32 %v421, %v420
    %v423 = vmul.f32 %v422, %v421
    %v424 = vmul.f32 0.5, %v423
    %v425 = vsub.f32 1.5, %v424
    %v426 = vmul.f32 %v421, %v425
    %vm427 = vweird.f32 %v420
    %vm428 = vweird.f32 %v421
    %vm429 = vmor %vm427, %vm428
    %v430 = vsel %vm429, %v421, %v426
    %v431 = vmul.f32 %v412, %v430
    %432 = vrot.lane.b32.xlu0 %v294, 64
    %v433 = vpop.permute.xlu0 %432
    %v435 = vmul.f32 %v334, %v433
    %437 = vrot.lane.b32.xlu0 %v435, 96
    %v438 = vpop.permute.xlu0 %437
    %v440 = vsel %vm80, %v438, 0.0
    %441 = vadd.xlane.f32.xlu0 %v440
    %v442 = vpop.xlane.xlu0 %441
    %443 = vrot.lane.b32.xlu0 %v361, 32
    %v444 = vpop.permute.xlu0 %443
    %v446 = vsel %vm80, %v444, 0.0
    %447 = vadd.xlane.f32.xlu0 %v446
    %v448 = vpop.xlane.xlu0 %447
    %v449 = vmul.f32 %v356, %v448
    %v450 = vmax.f32 %v449, 1e-16
    %v451 = vrsqrt.pop %v450
    %v452 = vmul.f32 %v451, %v450
    %v453 = vmul.f32 %v452, %v451
    %v454 = vmul.f32 0.5, %v453
    %v455 = vsub.f32 1.5, %v454
    %v456 = vmul.f32 %v451, %v455
    %vm457 = vweird.f32 %v450
    %vm458 = vweird.f32 %v451
    %vm459 = vmor %vm457, %vm458
    %v460 = vsel %vm459, %v451, %v456
    %v461 = vmul.f32 %v442, %v460
    %v462 = vmul.f32 %v275, %v313
    %v463 = vsel %vm80, %v462, 0.0
    %464 = vadd.xlane.f32.xlu0 %v463
    %v465 = vpop.xlane.xlu0 %464
    %v466 = vmul.f32 %v313, %v313
    %v467 = vsel %vm80, %v466, 0.0
    %468 = vadd.xlane.f32.xlu0 %v467
    %v469 = vpop.xlane.xlu0 %468
    %v470 = vmul.f32 %v338, %v469
    %v471 = vmax.f32 %v470, 1e-16
    %v472 = vrsqrt.pop %v471
    %v473 = vmul.f32 %v472, %v471
    %v474 = vmul.f32 %v473, %v472
    %v475 = vmul.f32 0.5, %v474
    %v476 = vsub.f32 1.5, %v475
    %v477 = vmul.f32 %v472, %v476
    %vm478 = vweird.f32 %v471
    %vm479 = vweird.f32 %v472
    %vm480 = vmor %vm478, %vm479
    %v481 = vsel %vm480, %v472, %v477
    %v482 = vmul.f32 %v465, %v481
    %484 = vrot.lane.b32.xlu0 %v313, 96
    %v485 = vpop.permute.xlu0 %484
    %v487 = vmul.f32 %v334, %v485
    %v488 = vsel %vm80, %v487, 0.0
    %489 = vadd.xlane.f32.xlu0 %v488
    %v490 = vpop.xlane.xlu0 %489
    %492 = vrot.lane.b32.xlu0 %v466, 96
    %v493 = vpop.permute.xlu0 %492
    %v495 = vsel %vm80, %v493, 0.0
    %496 = vadd.xlane.f32.xlu0 %v495
    %v497 = vpop.xlane.xlu0 %496
    %v498 = vmul.f32 %v342, %v497
    %v499 = vmax.f32 %v498, 1e-16
    %v500 = vrsqrt.pop %v499
    %v501 = vmul.f32 %v500, %v499
    %v502 = vmul.f32 %v501, %v500
    %v503 = vmul.f32 0.5, %v502
    %v504 = vsub.f32 1.5, %v503
    %v505 = vmul.f32 %v500, %v504
    %vm506 = vweird.f32 %v499
    %vm507 = vweird.f32 %v500
    %vm508 = vmor %vm506, %vm507
    %v509 = vsel %vm508, %v500, %v505
    %v510 = vmul.f32 %v490, %v509
    %512 = vrot.lane.b32.xlu0 %v462, 64
    %v513 = vpop.permute.xlu0 %512
    %v515 = vsel %vm80, %v513, 0.0
    %516 = vadd.xlane.f32.xlu0 %v515
    %v517 = vpop.xlane.xlu0 %516
    %518 = vrot.lane.b32.xlu0 %v466, 64
    %v519 = vpop.permute.xlu0 %518
    %v521 = vsel %vm80, %v519, 0.0
    %522 = vadd.xlane.f32.xlu0 %v521
    %v523 = vpop.xlane.xlu0 %522
    %v524 = vmul.f32 %v349, %v523
    %v525 = vmax.f32 %v524, 1e-16
    %v526 = vrsqrt.pop %v525
    %v527 = vmul.f32 %v526, %v525
    %v528 = vmul.f32 %v527, %v526
    %v529 = vmul.f32 0.5, %v528
    %v530 = vsub.f32 1.5, %v529
    %v531 = vmul.f32 %v526, %v530
    %vm532 = vweird.f32 %v525
    %vm533 = vweird.f32 %v526
    %vm534 = vmor %vm532, %vm533
    %v535 = vsel %vm534, %v526, %v531
    %v536 = vmul.f32 %v517, %v535
    %537 = vrot.lane.b32.xlu0 %v313, 64
    %v538 = vpop.permute.xlu0 %537
    %v540 = vmul.f32 %v334, %v538
    %542 = vrot.lane.b32.xlu0 %v540, 96
    %v543 = vpop.permute.xlu0 %542
    %v545 = vsel %vm80, %v543, 0.0
    %546 = vadd.xlane.f32.xlu0 %v545
    %v547 = vpop.xlane.xlu0 %546
    %548 = vrot.lane.b32.xlu0 %v466, 32
    %v549 = vpop.permute.xlu0 %548
    %v551 = vsel %vm80, %v549, 0.0
    %552 = vadd.xlane.f32.xlu0 %v551
    %v553 = vpop.xlane.xlu0 %552
    %v554 = vmul.f32 %v356, %v553
    %v555 = vmax.f32 %v554, 1e-16
    %v556 = vrsqrt.pop %v555
    %v557 = vmul.f32 %v556, %v555
    %v558 = vmul.f32 %v557, %v556
    %v559 = vmul.f32 0.5, %v558
    %v560 = vsub.f32 1.5, %v559
    %v561 = vmul.f32 %v556, %v560
    %vm562 = vweird.f32 %v555
    %vm563 = vweird.f32 %v556
    %vm564 = vmor %vm562, %vm563
    %v565 = vsel %vm564, %v556, %v561
    %v566 = vmul.f32 %v547, %v565
    %v567 = vadd.f32 %v377, %v431
    %v568 = vmul.f32 %v567, 0.5
    %v569 = vadd.f32 %v482, %v536
    %v570 = vmul.f32 %v569, 0.5
    %v571 = vadd.f32 %v405, %v461
    %v572 = vadd.f32 %v510, %v566
    %v573 = vmul.f32 %v568, 0.6
    %v574 = vmul.f32 %v571, 0.4
    %v575 = vadd.f32 %v573, %v574
    %v576 = vmul.f32 %v570, 0.6
    %v577 = vmul.f32 %v572, 0.4
    %v578 = vadd.f32 %v576, %v577
    %v579 = vsub.f32 %v575, %v578
    %580 = vst [vmem:[%s5] sm:$0xff] %v579
    // Predicated region
    $region30: #{gpbpr_forward.1} parent=1 // pred_check
      _
    $region31: #{gpbpr_forward.1} parent=1 // pred_check_branch
      %582 = sbr.rel (0) target = $region33
    $region32: #{gpbpr_forward.1} parent=1 // pred_region
      _
    $region33: #{gpbpr_forward.1} parent=1 // pred_fallthru
      _
    // Predicated region
    $region34: #{gpbpr_forward.1} parent=1 // pred_check
      _
    $region35: #{gpbpr_forward.1} parent=1 // pred_check_branch
      %584 = sbr.rel (0) target = $region37
    $region36: #{gpbpr_forward.1} parent=1 // pred_region
      _
    $region37: #{gpbpr_forward.1} parent=1 // pred_fallthru
      _
    %585 = vsyncpa [#allocation3], 1
    %586 = vsyncpa [#allocation5], 1

</llo_original>
